<compile_context>
chip_gen: v6e
topology: v6e:2x2x1
jax: 0.10.0
libtpu: 0.0.40
codegen_flags: <defaults>
</compile_context>

<pallas_src>
import math

import jax
import jax.numpy as jnp
from jax.experimental import pallas as pl
from jax.experimental.pallas import tpu as pltpu


def _spatial_attention_kernel(freq_ref, loc_ref, mask_ref, zre_t_ref, zim_t_ref,
                              x_ref, o_ref, probs_ref):
    t = pl.program_id(1)

    @pl.when(t == 0)
    def _compute_probs():
        # ---- T-invariant path: runs once per batch element ------------------
        fx = freq_ref[0:1, :]                      # (1, H2)
        fy = freq_ref[1:2, :]                      # (1, H2)
        lx = loc_ref[:, 0:1]                       # (C_in, 1)
        ly = loc_ref[:, 1:2]                       # (C_in, 1)

        two_pi = jnp.float32(2.0 * math.pi)
        phase = two_pi * (lx * fx + ly * fy)       # (C_in, H2)  (VPU broadcast)
        cos_f = jnp.cos(phase)                     # EUP, once per batch
        sin_f = jnp.sin(phase)

        # A[c, o] = sum_k cos_f[c,k] * Z_re[o,k] + sin_f[c,k] * Z_im[o,k]
        # Z passed pre-transposed -> natural (M,K)x(K,N) MXU orientation.
        A = (jnp.dot(cos_f, zre_t_ref[...], preferred_element_type=jnp.float32) +
             jnp.dot(sin_f, zim_t_ref[...], preferred_element_type=jnp.float32))

        # softmax over input channels (torch: softmax(A, dim=1) on (B,C_in,C_out))
        m = jnp.max(A, axis=0, keepdims=True)                       # (1, C_out)
        e = jnp.exp(A - m)
        inv_den = pl.reciprocal(jnp.sum(e, axis=0, keepdims=True), approx=True)
        p = e * inv_den                                             # (C_in, C_out)

        # drop-circle mask + renormalization over C_in (eps guards all-dropped)
        p = p * mask_ref[...]                                       # (C_in, 1)
        den = jnp.sum(p, axis=0, keepdims=True) + jnp.float32(1e-9)
        p = p * pl.reciprocal(den, approx=True)

        probs_ref[...] = p.astype(probs_ref.dtype)   # persist as bf16 scratch

    # ---- Per-T-tile path: single MXU matmul, bf16 operands / f32 accum ------
    x = x_ref[...].astype(jnp.bfloat16)              # (T_tile, C_in)
    o_ref[...] = jnp.dot(x, probs_ref[...],
                         preferred_element_type=jnp.float32).astype(o_ref.dtype)


def spatial_attention_forward(inputs, locations, z_re, z_im, mask,
                              n_harmonics, *, t_tile=512):
    """inputs (B,T,C_in), locations (B,C_in,2), z_* (C_out,H^2), mask (B,C_in,1)."""
    B, T, C_in = inputs.shape
    C_out, H2 = z_re.shape
    assert H2 == n_harmonics * n_harmonics
    assert mask.shape == (B, C_in, 1)

    # T tile: full T for short sequences, otherwise a multiple of 8 (sublane).
    t_tile = T if T <= t_tile else t_tile
    num_t = pl.cdiv(T, t_tile)

    # Fourier frequency grid, packed into a single (2, H2) slab -> one DMA.
    ii, jj = jnp.meshgrid(jnp.arange(n_harmonics), jnp.arange(n_harmonics),
                          indexing="ij")
    freq = jnp.stack([ii.reshape(-1), jj.reshape(-1)], axis=0).astype(jnp.float32)

    # Pre-transpose Z so the in-kernel matmuls need no relayout (free at trace time).
    z_re_t = jnp.transpose(z_re).astype(jnp.float32)   # (H2, C_out)
    z_im_t = jnp.transpose(z_im).astype(jnp.float32)   # (H2, C_out)

    grid_spec = pltpu.PrefetchScalarGridSpec(
        num_scalar_prefetch=0,
        grid=(B, num_t),
        in_specs=[
            pl.BlockSpec((2, H2), lambda b, t: (0, 0)),                 # freq
            pl.BlockSpec((None, C_in, 2), lambda b, t: (b, 0, 0)),      # locations
            pl.BlockSpec((None, C_in, 1), lambda b, t: (b, 0, 0)),      # mask
            pl.BlockSpec((H2, C_out), lambda b, t: (0, 0)),             # Z_re^T
            pl.BlockSpec((H2, C_out), lambda b, t: (0, 0)),             # Z_im^T
            pl.BlockSpec((None, t_tile, C_in), lambda b, t: (b, t, 0)), # inputs
        ],
        out_specs=pl.BlockSpec((None, t_tile, C_out), lambda b, t: (b, t, 0)),
        scratch_shapes=[pltpu.VMEM((C_in, C_out), jnp.bfloat16)],       # probs
    )

    out = pl.pallas_call(
        _spatial_attention_kernel,
        out_shape=jax.ShapeDtypeStruct((B, T, C_out), jnp.float32),
        grid_spec=grid_spec,
        compiler_params=pltpu.CompilerParams(
            # B parallel (megacore on v7x); T arbitrary so the probs scratch
            # computed at t == 0 is reused across the batch element's T tiles.
            dimension_semantics=("parallel", "arbitrary")),
    )(freq, locations.astype(jnp.float32), mask.astype(jnp.float32),
      z_re_t, z_im_t, inputs)
    return out


def reference_forward(inputs, locations, z_re, z_im, mask, n_harmonics):
    """Pure-JAX f32 reference mirroring the PyTorch code (same drop mask)."""
    ii, jj = jnp.meshgrid(jnp.arange(n_harmonics), jnp.arange(n_harmonics),
                          indexing="ij")
    freq = jnp.stack([ii.reshape(-1), jj.reshape(-1)], axis=-1).astype(jnp.float32)
    phase = 2.0 * math.pi * jnp.einsum("kd,bcd->bkc", freq, locations)   # (B,H2,C_in)
    A = jnp.einsum("ok,bkc->boc", z_re, jnp.cos(phase)) + \
        jnp.einsum("ok,bkc->boc", z_im, jnp.sin(phase))                  # (B,C_out,C_in)
    A = jnp.transpose(A, (0, 2, 1))                                      # (B,C_in,C_out)
    probs = jax.nn.softmax(A, axis=1)
    probs = probs * mask                                                 # (B,C_in,1)
    probs = probs / jnp.sum(probs, axis=1, keepdims=True)
    return jnp.einsum("btc,bco->bto", inputs, probs)


if __name__ == "__main__":
    B, T, C_in = 2, 8, 16
    n_output_channels = 4
    n_harmonics = 3
    drop_distance = 0.3
    H2 = n_harmonics * n_harmonics

    key = jax.random.PRNGKey(0)
    k_in, k_loc, k_zre, k_zim, k_drop = jax.random.split(key, 5)

    inputs = jax.random.normal(k_in, (B, T, C_in), dtype=jnp.float32)
    locations = jax.random.uniform(k_loc, (B, C_in, 2), dtype=jnp.float32)

    # Xavier-uniform init for Z_re / Z_im: fan_in = H^2, fan_out = C_out
    bound = math.sqrt(6.0 / (H2 + n_output_channels))
    z_re = jax.random.uniform(k_zre, (n_output_channels, H2),
                              minval=-bound, maxval=bound, dtype=jnp.float32)
    z_im = jax.random.uniform(k_zim, (n_output_channels, H2),
                              minval=-bound, maxval=bound, dtype=jnp.float32)

    # Random drop-circle center: one input location per batch element.
    # TODO(synk): torch draws this with torch.randint every forward; here it is
    # sampled host-side with a fixed PRNG key (not inside the kernel).
    drop_idx = jax.random.randint(k_drop, (B,), 0, C_in)
    loc_drop = jnp.take_along_axis(locations, drop_idx[:, None, None], axis=1)  # (B,1,2)
    dist = jnp.sqrt(jnp.sum((locations - loc_drop) ** 2, axis=-1))              # (B,C_in)
    mask = (dist >= drop_distance).astype(jnp.float32)[:, :, None]              # (B,C_in,1)

    out = spatial_attention_forward(inputs, locations, z_re, z_im, mask,
                                    n_harmonics)
    out = jax.block_until_ready(out)

    ref = reference_forward(inputs, locations, z_re, z_im, mask, n_harmonics)
    assert out.shape == (B, T, n_output_channels)
    # Tolerance accounts for bf16 MXU operands (f32 accumulation) in the final
    # matmul and the approximate EUP reciprocals.
    assert jnp.allclose(out, ref, rtol=2e-2, atol=2e-2), "mismatch vs reference"

    print("KERNEL_OK")
</pallas_src>

<mosaic_0001>
module attributes {stable_mosaic.version = 11 : i64} {
  func.func @_spatial_attention_kernel(%arg0: i32, %arg1: i32, %arg2: memref<2x9xf32, #tpu.memory_space<vmem>>, %arg3: memref<1x16x2xf32, #tpu.memory_space<vmem>>, %arg4: memref<1x16x1xf32, #tpu.memory_space<vmem>>, %arg5: memref<9x4xf32, #tpu.memory_space<vmem>>, %arg6: memref<9x4xf32, #tpu.memory_space<vmem>>, %arg7: memref<1x8x16xf32, #tpu.memory_space<vmem>>, %arg8: memref<1x8x4xf32, #tpu.memory_space<vmem>>, %arg9: memref<16x4xbf16, #tpu.memory_space<vmem>>) attributes {dimension_semantics = [#tpu.dimension_semantics<parallel>, #tpu.dimension_semantics<arbitrary>], iteration_bounds = array<i64: 2, 1>, scalar_prefetch = 0 : i64, scratch_operands = 1 : i64, tpu.core_type = #tpu.core_type<tc>, window_params = [{pipeline_mode = #tpu.pipeline_mode<synchronous>, transform_indices = @transform_0, window_bounds = array<i64: 2, 9>}, {transform_indices = @transform_1, window_bounds = array<i64: 1, 16, 2>}, {transform_indices = @transform_2, window_bounds = array<i64: 1, 16, 1>}, {pipeline_mode = #tpu.pipeline_mode<synchronous>, transform_indices = @transform_3, window_bounds = array<i64: 9, 4>}, {pipeline_mode = #tpu.pipeline_mode<synchronous>, transform_indices = @transform_4, window_bounds = array<i64: 9, 4>}, {transform_indices = @transform_5, window_bounds = array<i64: 1, 8, 16>}, {transform_indices = @transform_6, window_bounds = array<i64: 1, 8, 4>}]} {
    %c0_i32 = arith.constant 0 : i32
    %0 = arith.cmpi eq, %arg1, %c0_i32 : i32
    %1 = arith.extui %0 : i1 to i32
    %c0_i32_0 = arith.constant 0 : i32
    %2 = arith.cmpi ne, %1, %c0_i32_0 : i32
    scf.if %2 {
      %c0_8 = arith.constant 0 : index
      %c0_9 = arith.constant 0 : index
      %11 = vector.load %arg2[%c0_8, %c0_9] : memref<2x9xf32, #tpu.memory_space<vmem>>, vector<1x9xf32>
      %c1 = arith.constant 1 : index
      %c0_10 = arith.constant 0 : index
      %12 = vector.load %arg2[%c1, %c0_10] : memref<2x9xf32, #tpu.memory_space<vmem>>, vector<1x9xf32>
      %c0_11 = arith.constant 0 : index
      %c0_12 = arith.constant 0 : index
      %c0_13 = arith.constant 0 : index
      %13 = vector.load %arg3[%c0_11, %c0_12, %c0_13] : memref<1x16x2xf32, #tpu.memory_space<vmem>>, vector<1x16x1xf32>
      %14 = vector.shape_cast %13 : vector<1x16x1xf32> to vector<16x1xf32>
      %c0_14 = arith.constant 0 : index
      %c0_15 = arith.constant 0 : index
      %c1_16 = arith.constant 1 : index
      %15 = vector.load %arg3[%c0_14, %c0_15, %c1_16] : memref<1x16x2xf32, #tpu.memory_space<vmem>>, vector<1x16x1xf32>
      %16 = vector.shape_cast %15 : vector<1x16x1xf32> to vector<16x1xf32>
      %17 = vector.broadcast %14 : vector<16x1xf32> to vector<16x9xf32>
      %18 = vector.broadcast %11 : vector<1x9xf32> to vector<16x9xf32>
      %19 = arith.mulf %17, %18 : vector<16x9xf32>
      %20 = vector.broadcast %16 : vector<16x1xf32> to vector<16x9xf32>
      %21 = vector.broadcast %12 : vector<1x9xf32> to vector<16x9xf32>
      %22 = arith.mulf %20, %21 : vector<16x9xf32>
      %23 = arith.addf %19, %22 : vector<16x9xf32>
      %cst_17 = arith.constant 6.28318548 : f32
      %24 = vector.broadcast %cst_17 : f32 to vector<16x9xf32>
      %25 = arith.mulf %24, %23 : vector<16x9xf32>
      %26 = math.cos %25 : vector<16x9xf32>
      %27 = math.sin %25 : vector<16x9xf32>
      %c0_18 = arith.constant 0 : index
      %c0_19 = arith.constant 0 : index
      %28 = vector.load %arg5[%c0_18, %c0_19] : memref<9x4xf32, #tpu.memory_space<vmem>>, vector<9x4xf32>
      %cst_20 = arith.constant dense<0.000000e+00> : vector<16x4xf32>
      %29 = tpu.matmul %26, %28, %cst_20 {dimension_numbers = #tpu.dot_dimension_numbers<[1], [0], [0], [1], [0, 0, 1, 1], [], []>} : vector<16x9xf32>, vector<9x4xf32>, vector<16x4xf32> -> vector<16x4xf32>
      %c0_21 = arith.constant 0 : index
      %c0_22 = arith.constant 0 : index
      %30 = vector.load %arg6[%c0_21, %c0_22] : memref<9x4xf32, #tpu.memory_space<vmem>>, vector<9x4xf32>
      %cst_23 = arith.constant dense<0.000000e+00> : vector<16x4xf32>
      %31 = tpu.matmul %27, %30, %cst_23 {dimension_numbers = #tpu.dot_dimension_numbers<[1], [0], [0], [1], [0, 0, 1, 1], [], []>} : vector<16x9xf32>, vector<9x4xf32>, vector<16x4xf32> -> vector<16x4xf32>
      %32 = arith.addf %29, %31 : vector<16x4xf32>
      %cst_24 = arith.constant dense<0xFF800000> : vector<4xf32>
      %33 = vector.multi_reduction <maximumf>, %32, %cst_24 [0] : vector<16x4xf32> to vector<4xf32>
      %34 = vector.shape_cast %33 : vector<4xf32> to vector<1x4xf32>
      %35 = vector.broadcast %34 : vector<1x4xf32> to vector<16x4xf32>
      %36 = arith.subf %32, %35 : vector<16x4xf32>
      %37 = math.exp %36 : vector<16x4xf32>
      %cst_25 = arith.constant dense<0.000000e+00> : vector<4xf32>
      %38 = vector.multi_reduction <add>, %37, %cst_25 [0] : vector<16x4xf32> to vector<4xf32>
      %39 = vector.shape_cast %38 : vector<4xf32> to vector<1x4xf32>
      %40 = tpu.reciprocal %39 {approx = true} : vector<1x4xf32> -> vector<1x4xf32>
      %41 = vector.broadcast %40 : vector<1x4xf32> to vector<16x4xf32>
      %42 = arith.mulf %37, %41 : vector<16x4xf32>
      %c0_26 = arith.constant 0 : index
      %c0_27 = arith.constant 0 : index
      %c0_28 = arith.constant 0 : index
      %43 = vector.load %arg4[%c0_26, %c0_27, %c0_28] : memref<1x16x1xf32, #tpu.memory_space<vmem>>, vector<1x16x1xf32>
      %44 = vector.shape_cast %43 : vector<1x16x1xf32> to vector<16x1xf32>
      %45 = vector.broadcast %44 : vector<16x1xf32> to vector<16x4xf32>
      %46 = arith.mulf %42, %45 : vector<16x4xf32>
      %cst_29 = arith.constant dense<0.000000e+00> : vector<4xf32>
      %47 = vector.multi_reduction <add>, %46, %cst_29 [0] : vector<16x4xf32> to vector<4xf32>
      %48 = vector.shape_cast %47 : vector<4xf32> to vector<1x4xf32>
      %cst_30 = arith.constant 9.99999971E-10 : f32
      %49 = vector.broadcast %cst_30 : f32 to vector<1x4xf32>
      %50 = arith.addf %48, %49 : vector<1x4xf32>
      %51 = tpu.reciprocal %50 {approx = true} : vector<1x4xf32> -> vector<1x4xf32>
      %52 = vector.broadcast %51 : vector<1x4xf32> to vector<16x4xf32>
      %53 = arith.mulf %46, %52 : vector<16x4xf32>
      %54 = arith.truncf %53 : vector<16x4xf32> to vector<16x4xbf16>
      %c0_31 = arith.constant 0 : index
      %c0_32 = arith.constant 0 : index
      %55 = vector.load %arg9[%c0_31, %c0_32] : memref<16x4xbf16, #tpu.memory_space<vmem>>, vector<16x4xbf16>
      tpu.vector_store %arg9[%c0_31, %c0_32], %54 {strides = array<i32>} : memref<16x4xbf16, #tpu.memory_space<vmem>>, vector<16x4xbf16>,
    } else {
    }
    %c0 = arith.constant 0 : index
    %c0_1 = arith.constant 0 : index
    %c0_2 = arith.constant 0 : index
    %3 = vector.load %arg7[%c0, %c0_1, %c0_2] : memref<1x8x16xf32, #tpu.memory_space<vmem>>, vector<1x8x16xf32>
    %4 = vector.shape_cast %3 : vector<1x8x16xf32> to vector<8x16xf32>
    %5 = arith.truncf %4 : vector<8x16xf32> to vector<8x16xbf16>
    %c0_3 = arith.constant 0 : index
    %c0_4 = arith.constant 0 : index
    %6 = vector.load %arg9[%c0_3, %c0_4] : memref<16x4xbf16, #tpu.memory_space<vmem>>, vector<16x4xbf16>
    %cst = arith.constant dense<0.000000e+00> : vector<8x4xf32>
    %7 = tpu.matmul %5, %6, %cst {dimension_numbers = #tpu.dot_dimension_numbers<[1], [0], [0], [1], [0, 0, 1, 1], [], []>} : vector<8x16xbf16>, vector<16x4xbf16>, vector<8x4xf32> -> vector<8x4xf32>
    %c0_5 = arith.constant 0 : index
    %c0_6 = arith.constant 0 : index
    %c0_7 = arith.constant 0 : index
    %8 = vector.load %arg8[%c0_5, %c0_6, %c0_7] : memref<1x8x4xf32, #tpu.memory_space<vmem>>, vector<1x8x4xf32>
    %9 = vector.shape_cast %8 : vector<1x8x4xf32> to vector<8x4xf32>
    %10 = vector.shape_cast %7 : vector<8x4xf32> to vector<1x8x4xf32>
    tpu.vector_store %arg8[%c0_5, %c0_6, %c0_7], %10 {strides = array<i32>} : memref<1x8x4xf32, #tpu.memory_space<vmem>>, vector<1x8x4xf32>,
    return
  }
  func.func @transform_0(%arg0: i32, %arg1: i32) -> (i32, i32) {
    %c0_i32 = arith.constant 0 : i32
    %c0_i32_0 = arith.constant 0 : i32
    %c0_i32_1 = arith.constant 0 : i32
    return %c0_i32, %c0_i32_0 : i32, i32
  }
  func.func @transform_1(%arg0: i32, %arg1: i32) -> (i32, i32, i32) {
    %c0_i32 = arith.constant 0 : i32
    %c0_i32_0 = arith.constant 0 : i32
    %c0_i32_1 = arith.constant 0 : i32
    return %arg0, %c0_i32, %c0_i32_0 : i32, i32, i32
  }
  func.func @transform_2(%arg0: i32, %arg1: i32) -> (i32, i32, i32) {
    %c0_i32 = arith.constant 0 : i32
    %c0_i32_0 = arith.constant 0 : i32
    %c0_i32_1 = arith.constant 0 : i32
    return %arg0, %c0_i32, %c0_i32_0 : i32, i32, i32
  }
  func.func @transform_3(%arg0: i32, %arg1: i32) -> (i32, i32) {
    %c0_i32 = arith.constant 0 : i32
    %c0_i32_0 = arith.constant 0 : i32
    %c0_i32_1 = arith.constant 0 : i32
    return %c0_i32, %c0_i32_0 : i32, i32
  }
  func.func @transform_4(%arg0: i32, %arg1: i32) -> (i32, i32) {
    %c0_i32 = arith.constant 0 : i32
    %c0_i32_0 = arith.constant 0 : i32
    %c0_i32_1 = arith.constant 0 : i32
    return %c0_i32, %c0_i32_0 : i32, i32
  }
  func.func @transform_5(%arg0: i32, %arg1: i32) -> (i32, i32, i32) {
    %c0_i32 = arith.constant 0 : i32
    %c0_i32_0 = arith.constant 0 : i32
    return %arg0, %arg1, %c0_i32 : i32, i32, i32
  }
  func.func @transform_6(%arg0: i32, %arg1: i32) -> (i32, i32, i32) {
    %c0_i32 = arith.constant 0 : i32
    %c0_i32_0 = arith.constant 0 : i32
    return %arg0, %arg1, %c0_i32 : i32, i32, i32
  }
}

</mosaic_0001>

<llo_original>
// kernel: tpu_custom_call.1
$region0: #{tpu_custom_call.1}
  #allocation0 [shape = 'u32[]', space=smem, size = 0x4, offset = 0x4, fixed_abs, tag = 'smem constant byte address 0x4 - core index']
  #allocation1 [shape = 'u32[144,128]{1,0:T(1,128)}', space=vmem, size = 0x12000, scoped, tag = 'internal scratch']
  #allocation2 [shape = 'bf16[16,4]{1,0:T(8,128)(2,1)}', space=vmem, size = 0x1000, scoped, tag = 'scratch operand']
  %s0 = inlined_call_operand.vmem [shape: f32[2,9], index: 0, kind: input, shape index: {}]
  %s1 = inlined_call_operand.vmem [shape: f32[2,16,2], index: 1, kind: input, shape index: {}]
  %s2 = inlined_call_operand.vmem [shape: f32[2,16,1], index: 2, kind: input, shape index: {}]
  %s3 = inlined_call_operand.vmem [shape: f32[9,4], index: 3, kind: input, shape index: {}]
  %s4 = inlined_call_operand.vmem [shape: f32[9,4], index: 4, kind: input, shape index: {}]
  %s5 = inlined_call_operand.vmem [shape: f32[2,8,16], index: 5, kind: input, shape index: {}]
  %s6 = inlined_call_operand.vmem [shape: f32[2,8,4], index: 6, kind: output, shape index: {}]
  %s7 = sld [smem:[#allocation0]]
  $region61: #{tpu_custom_call.1} parent=0
    _
  %s9 = ssub.s32 1, %s7
  %s10 = scalar_select 0, %s9, %s7
  loop: start=0, step=1, limit=4
  $region2: #{tpu_custom_call.1} parent=0 // loop_pre_header
    _
  $region3: #{tpu_custom_call.1} parent=0 // loop_header
    %s12 = sphi 0, %s16
    %p13 = scmp.ge.s32.totalorder %s12, 4
    %s19 = sphi 0, %s31
    %s20 = sphi 0, %s27
    %s21 = sphi 0, %s19
    %s22 = sphi 0, %s20
    %s23 = sphi 0, %s21
    %s24 = sphi 0, %s22
    %s32 = sphi 0, %s32
    %s34 = sphi 0, %s32
    %s35 = sphi 0, %s34
    %s49 = sphi 0, %s35
    %s55 = sphi 0, %s57
    %s58 = sphi 0, %s55
    %s59 = sphi 0, %s58
    %s75 = sphi 0, %s59
    %s81 = sphi 0, %s83
    %s84 = sphi 0, %s81
    %s85 = sphi 0, %s84
    %s101 = sphi 0, %s85
    %s105 = sphi 0, %s105
    %s107 = sphi 0, %s105
    %s108 = sphi 0, %s107
    %s122 = sphi 0, %s108
    %s126 = sphi 0, %s126
    %s128 = sphi 0, %s126
    %s129 = sphi 0, %s128
    %s143 = sphi 0, %s129
    %s151 = sphi 0, %s153
    %s154 = sphi 0, %s151
    %s155 = sphi 0, %s154
    %s171 = sphi 0, %s155
    %s179 = sphi 0, %s181
    %s182 = sphi 0, %s179
    %s183 = sphi 0, %s182
    %s199 = sphi 0, %s183
  $region4: #{tpu_custom_call.1} parent=0 // loop_header_branch
    %15 = sbr.rel (%p13) target = $region8
  $region5: #{tpu_custom_call.1} parent=0 // loop_body
    %s17 = ssub.s32 %s12, 1
    %s18 = ssub.s32 %s12, 2
    %s25 = sadd.s32 1, %s20
    %p26 = scmp.ge.s32.totalorder %s25, 1
    %s27 = scalar_select %p26, 0, %s25
    %s28 = sadd.s32 1, %s19
    %s29 = scalar_select %p26, %s28, %s19
    %p30 = scmp.ge.s32.totalorder %s29, 2
    %s31 = scalar_select %p30, 0, %s29
    %s33 = sadd.s32 %s32, 1
    %p36 = scmp.eq.s32.totalorder %s12, 1
    %p37 = scmp.ne.s32.totalorder %s32, %s34
    %p38 = scmp.eq.s32.totalorder %s12, 0
    %p39 = por %p37, %p38
    %p40 = scmp.ne.s32.totalorder %s32, %s34
    %p41 = scmp.eq.s32.totalorder %s17, 1
    %p42 = por %p40, %p41
    %p43 = scmp.ne.s32.totalorder %s34, %s35
    %p44 = scmp.eq.s32.totalorder %s17, 0
    %p45 = por %p43, %p44
    %p46 = scmp.ne.s32.totalorder %s34, %s35
    %p47 = scmp.eq.s32.totalorder %s18, 1
    %p48 = por %p46, %p47
    %p50 = scmp.ne.s32.totalorder %s35, %s49
    %p51 = scmp.eq.s32.totalorder %s18, 0
    %p52 = por %p50, %p51
    %s53 = ssub.s32 %s19, %s31
    %p54 = scmp.eq.s32.totalorder %s53, 0
    %s56 = sadd.s32 %s55, 1
    %s57 = scalar_select %p54, %s55, %s56
    %p60 = pneg %p54
    %p61 = scmp.eq.s32.totalorder %s12, 1
    %p62 = por %p60, %p61
    %p63 = scmp.ne.s32.totalorder %s55, %s58
    %p64 = scmp.eq.s32.totalorder %s12, 0
    %p65 = por %p63, %p64
    %p66 = scmp.ne.s32.totalorder %s55, %s58
    %p67 = scmp.eq.s32.totalorder %s17, 1
    %p68 = por %p66, %p67
    %p69 = scmp.ne.s32.totalorder %s58, %s59
    %p70 = scmp.eq.s32.totalorder %s17, 0
    %p71 = por %p69, %p70
    %p72 = scmp.ne.s32.totalorder %s58, %s59
    %p73 = scmp.eq.s32.totalorder %s18, 1
    %p74 = por %p72, %p73
    %p76 = scmp.ne.s32.totalorder %s59, %s75
    %p77 = scmp.eq.s32.totalorder %s18, 0
    %p78 = por %p76, %p77
    %s79 = ssub.s32 %s19, %s31
    %p80 = scmp.eq.s32.totalorder %s79, 0
    %s82 = sadd.s32 %s81, 1
    %s83 = scalar_select %p80, %s81, %s82
    %p86 = pneg %p80
    %p87 = scmp.eq.s32.totalorder %s12, 1
    %p88 = por %p86, %p87
    %p89 = scmp.ne.s32.totalorder %s81, %s84
    %p90 = scmp.eq.s32.totalorder %s12, 0
    %p91 = por %p89, %p90
    %p92 = scmp.ne.s32.totalorder %s81, %s84
    %p93 = scmp.eq.s32.totalorder %s17, 1
    %p94 = por %p92, %p93
    %p95 = scmp.ne.s32.totalorder %s84, %s85
    %p96 = scmp.eq.s32.totalorder %s17, 0
    %p97 = por %p95, %p96
    %p98 = scmp.ne.s32.totalorder %s84, %s85
    %p99 = scmp.eq.s32.totalorder %s18, 1
    %p100 = por %p98, %p99
    %p102 = scmp.ne.s32.totalorder %s85, %s101
    %p103 = scmp.eq.s32.totalorder %s18, 0
    %p104 = por %p102, %p103
    %s106 = sadd.s32 %s105, 1
    %p109 = scmp.eq.s32.totalorder %s12, 1
    %p110 = scmp.ne.s32.totalorder %s105, %s107
    %p111 = scmp.eq.s32.totalorder %s12, 0
    %p112 = por %p110, %p111
    %p113 = scmp.ne.s32.totalorder %s105, %s107
    %p114 = scmp.eq.s32.totalorder %s17, 1
    %p115 = por %p113, %p114
    %p116 = scmp.ne.s32.totalorder %s107, %s108
    %p117 = scmp.eq.s32.totalorder %s17, 0
    %p118 = por %p116, %p117
    %p119 = scmp.ne.s32.totalorder %s107, %s108
    %p120 = scmp.eq.s32.totalorder %s18, 1
    %p121 = por %p119, %p120
    %p123 = scmp.ne.s32.totalorder %s108, %s122
    %p124 = scmp.eq.s32.totalorder %s18, 0
    %p125 = por %p123, %p124
    %s127 = sadd.s32 %s126, 1
    %p130 = scmp.eq.s32.totalorder %s12, 1
    %p131 = scmp.ne.s32.totalorder %s126, %s128
    %p132 = scmp.eq.s32.totalorder %s12, 0
    %p133 = por %p131, %p132
    %p134 = scmp.ne.s32.totalorder %s126, %s128
    %p135 = scmp.eq.s32.totalorder %s17, 1
    %p136 = por %p134, %p135
    %p137 = scmp.ne.s32.totalorder %s128, %s129
    %p138 = scmp.eq.s32.totalorder %s17, 0
    %p139 = por %p137, %p138
    %p140 = scmp.ne.s32.totalorder %s128, %s129
    %p141 = scmp.eq.s32.totalorder %s18, 1
    %p142 = por %p140, %p141
    %p144 = scmp.ne.s32.totalorder %s129, %s143
    %p145 = scmp.eq.s32.totalorder %s18, 0
    %p146 = por %p144, %p145
    %s147 = ssub.s32 %s19, %s31
    %s148 = ssub.s32 %s20, %s27
    %s149 = sor.u32 %s147, %s148
    %p150 = scmp.eq.s32.totalorder %s149, 0
    %s152 = sadd.s32 %s151, 1
    %s153 = scalar_select %p150, %s151, %s152
    %p156 = pneg %p150
    %p157 = scmp.eq.s32.totalorder %s12, 1
    %p158 = por %p156, %p157
    %p159 = scmp.ne.s32.totalorder %s151, %s154
    %p160 = scmp.eq.s32.totalorder %s12, 0
    %p161 = por %p159, %p160
    %p162 = scmp.ne.s32.totalorder %s151, %s154
    %p163 = scmp.eq.s32.totalorder %s17, 1
    %p164 = por %p162, %p163
    %p165 = scmp.ne.s32.totalorder %s154, %s155
    %p166 = scmp.eq.s32.totalorder %s17, 0
    %p167 = por %p165, %p166
    %p168 = scmp.ne.s32.totalorder %s154, %s155
    %p169 = scmp.eq.s32.totalorder %s18, 1
    %p170 = por %p168, %p169
    %p172 = scmp.ne.s32.totalorder %s155, %s171
    %p173 = scmp.eq.s32.totalorder %s18, 0
    %p174 = por %p172, %p173
    %s175 = ssub.s32 %s19, %s31
    %s176 = ssub.s32 %s20, %s27
    %s177 = sor.u32 %s175, %s176
    %p178 = scmp.eq.s32.totalorder %s177, 0
    %s180 = sadd.s32 %s179, 1
    %s181 = scalar_select %p178, %s179, %s180
    %p184 = pneg %p178
    %p185 = scmp.eq.s32.totalorder %s12, 1
    %p186 = por %p184, %p185
    %p187 = scmp.ne.s32.totalorder %s179, %s182
    %p188 = scmp.eq.s32.totalorder %s12, 0
    %p189 = por %p187, %p188
    %p190 = scmp.ne.s32.totalorder %s179, %s182
    %p191 = scmp.eq.s32.totalorder %s17, 1
    %p192 = por %p190, %p191
    %p193 = scmp.ne.s32.totalorder %s182, %s183
    %p194 = scmp.eq.s32.totalorder %s17, 0
    %p195 = por %p193, %p194
    %p196 = scmp.ne.s32.totalorder %s182, %s183
    %p197 = scmp.eq.s32.totalorder %s18, 1
    %p198 = por %p196, %p197
    %p200 = scmp.ne.s32.totalorder %s183, %s199
    %p201 = scmp.eq.s32.totalorder %s18, 0
    %p202 = por %p200, %p201
    %p203 = scmp.le.s32.totalorder 1, %s12
    %p204 = scmp.lt.s32.totalorder %s12, 3
    %p205 = pnand %p203, %p204
    %p206 = pneg %p205
    // Predicated region
    $region9: #{tpu_custom_call.1} parent=5 // pred_check
      _
    $region10: #{tpu_custom_call.1} parent=5 // pred_check_branch
      %208 = sbr.rel (%p205) target = $region12
    $region11: #{tpu_custom_call.1} parent=5 // pred_region
      %s209 = ssub.s32 %s12, 1
      // Predicated region
      $region13: #{tpu_custom_call.1} parent=11 // pred_check
        %p210 = pneg %p45
      $region14: #{tpu_custom_call.1} parent=11 // pred_check_branch
        %212 = sbr.rel (%p210) target = $region16
      $region15: #{tpu_custom_call.1} parent=11 // pred_region
        _
      $region16: #{tpu_custom_call.1} parent=11 // pred_fallthru
        _
      // Predicated region
      $region17: #{tpu_custom_call.1} parent=11 // pred_check
        %p213 = pneg %p118
      $region18: #{tpu_custom_call.1} parent=11 // pred_check_branch
        %215 = sbr.rel (%p213) target = $region20
      $region19: #{tpu_custom_call.1} parent=11 // pred_region
        _
      $region20: #{tpu_custom_call.1} parent=11 // pred_fallthru
        _
      // Predicated region
      $region21: #{tpu_custom_call.1} parent=11 // pred_check
        %p216 = pneg %p139
      $region22: #{tpu_custom_call.1} parent=11 // pred_check_branch
        %218 = sbr.rel (%p216) target = $region24
      $region23: #{tpu_custom_call.1} parent=11 // pred_region
        _
      $region24: #{tpu_custom_call.1} parent=11 // pred_fallthru
        _
    $region12: #{tpu_custom_call.1} parent=5 // pred_fallthru
      _
    %p219 = scmp.lt.s32.totalorder %s12, 2
    // Predicated region
    $region25: #{tpu_custom_call.1} parent=5 // pred_check
      %p220 = pneg %p219
    $region26: #{tpu_custom_call.1} parent=5 // pred_check_branch
      %222 = sbr.rel (%p220) target = $region28
    $region27: #{tpu_custom_call.1} parent=5 // pred_region
      // Predicated region
      $region29: #{tpu_custom_call.1} parent=27 // pred_check
        %p223 = pneg %p65
      $region30: #{tpu_custom_call.1} parent=27 // pred_check_branch
        %225 = sbr.rel (%p223) target = $region32
      $region31: #{tpu_custom_call.1} parent=27 // pred_region
        %p226 = scmp.lt.s32.totalorder %s19, 1
        %s227 = scalar_select %p226, %s19, 1
        %s228 = smul.addr %s227, 2
        %s229 = smul.addr %s228, 8
        %s230 = scalar_lea.vmem %s1, %s229
      $region32: #{tpu_custom_call.1} parent=27 // pred_fallthru
        _
      // Predicated region
      $region33: #{tpu_custom_call.1} parent=27 // pred_check
        %p231 = pneg %p91
      $region34: #{tpu_custom_call.1} parent=27 // pred_check_branch
        %233 = sbr.rel (%p231) target = $region36
      $region35: #{tpu_custom_call.1} parent=27 // pred_region
        %p234 = scmp.lt.s32.totalorder %s19, 1
        %s235 = scalar_select %p234, %s19, 1
        %s236 = smul.addr %s235, 2
        %s237 = smul.addr %s236, 8
        %s238 = scalar_lea.vmem %s2, %s237
      $region36: #{tpu_custom_call.1} parent=27 // pred_fallthru
        _
      // Predicated region
      $region37: #{tpu_custom_call.1} parent=27 // pred_check
        %p239 = pneg %p161
      $region38: #{tpu_custom_call.1} parent=27 // pred_check_branch
        %241 = sbr.rel (%p239) target = $region40
      $region39: #{tpu_custom_call.1} parent=27 // pred_region
        %p242 = scmp.lt.s32.totalorder %s19, 1
        %s243 = scalar_select %p242, %s19, 1
        %p244 = scmp.lt.s32.totalorder %s20, 0
        %s245 = scalar_select %p244, %s20, 0
        %s246 = sadd.s32 %s245, %s243
        %s247 = smul.addr %s246, 8
        %s248 = scalar_lea.vmem %s5, %s247
      $region40: #{tpu_custom_call.1} parent=27 // pred_fallthru
        _
    $region28: #{tpu_custom_call.1} parent=5 // pred_fallthru
      _
    %p249 = scmp.le.s32.totalorder 1, %s12
    %p250 = scmp.lt.s32.totalorder %s12, 3
    %p251 = pnand %p249, %p250
    %p252 = pneg %p251
    // Predicated region
    $region41: #{tpu_custom_call.1} parent=5 // pred_check
      _
    $region42: #{tpu_custom_call.1} parent=5 // pred_check_branch
      %254 = sbr.rel (%p251) target = $region44
    $region43: #{tpu_custom_call.1} parent=5 // pred_region
      %s255 = ssub.s32 %s12, 1
      %p256 = pneg %p45
      %p257 = pneg %p42
      %p258 = scmp.lt.s32.totalorder %s21, 1
      %s259 = scalar_select %p258, %s21, 1
      %s260 = smul.addr %s259, 2
      %s261 = smul.addr %s260, 8
      %s262 = scalar_lea.vmem %s1, %s261
      %p263 = pneg %p71
      %p264 = pneg %p68
      %p265 = scmp.lt.s32.totalorder %s21, 1
      %s266 = scalar_select %p265, %s21, 1
      %s267 = smul.addr %s266, 2
      %s268 = smul.addr %s267, 8
      %s269 = scalar_lea.vmem %s2, %s268
      %p270 = pneg %p97
      %p271 = pneg %p94
      %p272 = pneg %p118
      %p273 = pneg %p115
      %p274 = pneg %p139
      %p275 = pneg %p136
      %p276 = scmp.lt.s32.totalorder %s21, 1
      %s277 = scalar_select %p276, %s21, 1
      %p278 = scmp.lt.s32.totalorder %s22, 0
      %s279 = scalar_select %p278, %s22, 0
      %s280 = sadd.s32 %s279, %s277
      %s281 = smul.addr %s280, 8
      %s282 = scalar_lea.vmem %s5, %s281
      %p283 = pneg %p167
      %p284 = pneg %p164
      %p285 = pneg %p195
      %p286 = pneg %p192
      %p287 = scmp.lt.s32.totalorder %s21, 1
      %s288 = scalar_select %p287, %s21, 1
      %p289 = scmp.lt.s32.totalorder %s22, 0
      %s290 = scalar_select %p289, %s22, 0
      %s291 = sadd.s32 %s290, %s288
      %s292 = smul.addr %s291, 8
      %s293 = scalar_lea.vmem %s6, %s292
      %p294 = scmp.lt.s32.totalorder %s21, 1
      %s295 = scalar_select %p294, %s21, 1
      %s296 = smul.addr %s295, 2
      %s297 = smul.addr %s296, 8
      %s298 = scalar_lea.vmem %s1, %s297
      %p299 = scmp.lt.s32.totalorder %s21, 1
      %s300 = scalar_select %p299, %s21, 1
      %s301 = smul.addr %s300, 2
      %s302 = smul.addr %s301, 8
      %s303 = scalar_lea.vmem %s2, %s302
      %p304 = scmp.lt.s32.totalorder %s21, 1
      %s305 = scalar_select %p304, %s21, 1
      %p306 = scmp.lt.s32.totalorder %s22, 0
      %s307 = scalar_select %p306, %s22, 0
      %s308 = sadd.s32 %s307, %s305
      %s309 = smul.addr %s308, 8
      %s310 = scalar_lea.vmem %s5, %s309
      %p311 = scmp.lt.s32.totalorder %s21, 1
      %s312 = scalar_select %p311, %s21, 1
      %p313 = scmp.lt.s32.totalorder %s22, 0
      %s314 = scalar_select %p313, %s22, 0
      %s315 = sadd.s32 %s314, %s312
      %s316 = smul.addr %s315, 8
      %s317 = scalar_lea.vmem %s6, %s316
      %p319 = scmp.eq.s32.totalorder %s22, 0
      // Predicated region
      $region45: #{tpu_custom_call.1} parent=43 // pred_check
        %p320 = pneg %p319
      $region46: #{tpu_custom_call.1} parent=43 // pred_check_branch
        %322 = sbr.rel (%p320) target = $region48
      $region47: #{tpu_custom_call.1} parent=43 // pred_region
        %v323 = vld [vmem:[%s0] sm:$0x1]
        %v324 = vld [vmem:[%s0 + $0x1] sm:$0x1]
        %v325 = vld [vmem:[%s298] sm:$0xff]
        %v326 = vld [vmem:[%s298 + $0x8] sm:$0xff]
        %328 = vset.pattern.permute.xlu0 0
        %329 = vperm.xlu0 %328, %v325
        %v330 = vpop.permute.xlu0 %329
        %333 = vset.pattern.permute.xlu0 0
        %334 = vperm.xlu0 %333, %v326
        %v335 = vpop.permute.xlu0 %334
        %v337 = vlaneseq
        %v338 = vshrl.u32 %v337, 7
        %v339 = vsub.s32 0, %v338
        %v340 = vrot.slane %v323, %v339
        %v341 = vmul.f32 %v330, %v340
        %v342 = vmul.f32 %v335, %v340
        %343 = vset.pattern.permute.xlu0 1
        %344 = vperm.xlu0 %343, %v325
        %v345 = vpop.permute.xlu0 %344
        %347 = vset.pattern.permute.xlu0 1
        %348 = vperm.xlu0 %347, %v326
        %v349 = vpop.permute.xlu0 %348
        %v351 = vlaneseq
        %v352 = vshrl.u32 %v351, 7
        %v353 = vsub.s32 0, %v352
        %v354 = vrot.slane %v324, %v353
        %v355 = vmul.f32 %v345, %v354
        %v356 = vmul.f32 %v349, %v354
        %v357 = vadd.f32 %v341, %v355
        %v358 = vadd.f32 %v342, %v356
        %v359 = vmul.f32 %v357, 6.2831855
        %v360 = vmul.f32 %v358, 6.2831855
        %v361 = vand.u32 2147483647, %v359
        %vm362 = vcmp.le.f32.partialorder %v361, 0.7853982
        %vm363 = vcmp.lt.s32.totalorder %v359, 0
        %v364 = vand.u32 %v359, 2139095040
        %v365 = vshrl.u32 %v364, 23
        %v366 = vsub.s32 %v365, 127
        %v367 = vand.u32 2147483647, %v359
        %v368 = vand.u32 %v367, 8388607
        %v369 = vor.u32 %v368, 8388608
        %v370 = vsub.s32 0, %v369
        %v371 = vadd.s32 %v366, 1
        %vm372 = vcmp.gt.s32.totalorder %v371, 0
        %v373 = vsel %vm372, %v371, 0
        %v374 = vshrl.u32 %v373, 5
        %v375 = vand.u32 %v373, 31
        %v376 = vsub.s32 32, %v375
        %v377 = vshrl.u32 683565275, %v376
        %v378 = vshll.u32 683565275, %v375
        %v379 = vshrl.u32 2475754826, %v376
        %v380 = vor.u32 %v378, %v379
        %v381 = vshll.u32 2475754826, %v375
        %v382 = vshrl.u32 2131351028, %v376
        %v383 = vor.u32 %v381, %v382
        %v384 = vshll.u32 2131351028, %v375
        %v385 = vshrl.u32 2102212464, %v376
        %v386 = vor.u32 %v384, %v385
        %v387 = vshll.u32 2102212464, %v375
        %v388 = vshrl.u32 920167782, %v376
        %v389 = vor.u32 %v387, %v388
        %v390 = vshll.u32 920167782, %v375
        %v391 = vshrl.u32 1326507024, %v376
        %v392 = vor.u32 %v390, %v391
        %vm393 = vcmp.lt.s32.totalorder %v374, 1
        %vm394 = vcmp.lt.s32.totalorder %v374, 2
        %vm395 = vcmp.lt.s32.totalorder %v374, 3
        %vm396 = vcmp.lt.s32.totalorder %v374, 4
        %v397 = vsel %vm393, %v377, %v380
        %v398 = vsel %vm396, %v386, 2102212464
        %v399 = vsel %vm395, %v383, %v398
        %v400 = vsel %vm394, %v397, %v399
        %v401 = vsel %vm393, %v380, %v383
        %v402 = vsel %vm396, %v389, 920167782
        %v403 = vsel %vm395, %v386, %v402
        %v404 = vsel %vm394, %v401, %v403
        %v405 = vsel %vm393, %v383, %v386
        %v406 = vsel %vm396, %v392, 1326507024
        %v407 = vsel %vm395, %v389, %v406
        %v408 = vsel %vm394, %v405, %v407
        %v409 = vshll.u32 %v369, 8
        %v410 = vmul.u32.u64.compose %v409, %v408
        %v411 = vextract.low.u32 %v410
        %v412 = vextract.high.u32 %v410
        %v413 = vmul.u32.u64.compose %v409, %v404
        %v414 = vextract.low.u32 %v413
        %v415 = vextract.high.u32 %v413
        %v416 = vmul.u32 %v409, %v400
        %v417 = vadd.s32 %v412, %v414
        %vm418 = vc.u32 %v412, %v414
        %v419 = vadd.s32 %v415, 1
        %v420 = vsel %vm418, %v419, %v415
        %v421 = vadd.s32 %v416, %v420
        %v422 = vadd.s32 %v421, 536870912
        %v423 = vshrl.u32 %v422, 30
        %v424 = vshll.u32 %v423, 30
        %v425 = vsub.s32 %v421, %v424
        %vm426 = vcmp.lt.s32.totalorder %v425, 0
        %v427 = vsub.s32 0, %v425
        %v428 = vsel %vm426, %v427, %v425
        %v429 = vclz %v428
        %v430 = vsub.s32 %v429, 2
        %vm431 = vcmp.gt.s32.totalorder 0, %v430
        %v432 = vsel %vm431, 0, %v430
        %v433 = vsub.s32 32, %v432
        %v434 = vshll.u32 %v425, %v432
        %v435 = vshrl.u32 %v417, %v433
        %v436 = vor.u32 %v434, %v435
        %v437 = vsub.s32 4294967266, %v432
        %v438 = vadd.s32 %v437, 127
        %v439 = vshll.u32 %v438, 23
        %v440 = vor.u32 4788187, %v439
        %v441 = vand.u32 2147483647, %v440
        %v443 = vcvt.s32.f32 %v436
        %v444 = vmul.f32 %v443, %v441
        %v445 = vxor.u32 %v444, 2147483648
        %v446 = vsel %vm363, %v445, %v444
        %v447 = vsub.s32 4, %v423
        %v448 = vsel %vm363, %v447, %v423
        %v449 = vsel %vm362, %v359, %v446
        %v450 = vsel %vm362, 0, %v448
        %v451 = vcosq.f32.pop %v449
        %v452 = vsinq.f32.pop %v449
        %vm453 = vweird.f32 %v359
        %v454 = vand.u32 %v450, 3
        %vm455 = vcmp.lt.s32.totalorder %v454, 2
        %vm456 = vcmp.eq.s32.totalorder %v454, 0
        %v457 = vxor.u32 %v452, 2147483648
        %v458 = vsel %vm456, %v451, %v457
        %vm459 = vcmp.eq.s32.totalorder %v454, 2
        %v460 = vxor.u32 %v451, 2147483648
        %v461 = vsel %vm459, %v460, %v452
        %v462 = vsel %vm455, %v458, %v461
        %v463 = vsel %vm453, nan, %v462
        %v464 = vand.u32 2147483647, %v360
        %vm465 = vcmp.le.f32.partialorder %v464, 0.7853982
        %vm466 = vcmp.lt.s32.totalorder %v360, 0
        %v467 = vand.u32 %v360, 2139095040
        %v468 = vshrl.u32 %v467, 23
        %v469 = vsub.s32 %v468, 127
        %v470 = vand.u32 2147483647, %v360
        %v471 = vand.u32 %v470, 8388607
        %v472 = vor.u32 %v471, 8388608
        %v473 = vsub.s32 0, %v472
        %v474 = vadd.s32 %v469, 1
        %vm475 = vcmp.gt.s32.totalorder %v474, 0
        %v476 = vsel %vm475, %v474, 0
        %v477 = vshrl.u32 %v476, 5
        %v478 = vand.u32 %v476, 31
        %v479 = vsub.s32 32, %v478
        %v480 = vshrl.u32 683565275, %v479
        %v481 = vshll.u32 683565275, %v478
        %v482 = vshrl.u32 2475754826, %v479
        %v483 = vor.u32 %v481, %v482
        %v484 = vshll.u32 2475754826, %v478
        %v485 = vshrl.u32 2131351028, %v479
        %v486 = vor.u32 %v484, %v485
        %v487 = vshll.u32 2131351028, %v478
        %v488 = vshrl.u32 2102212464, %v479
        %v489 = vor.u32 %v487, %v488
        %v490 = vshll.u32 2102212464, %v478
        %v491 = vshrl.u32 920167782, %v479
        %v492 = vor.u32 %v490, %v491
        %v493 = vshll.u32 920167782, %v478
        %v494 = vshrl.u32 1326507024, %v479
        %v495 = vor.u32 %v493, %v494
        %vm496 = vcmp.lt.s32.totalorder %v477, 1
        %vm497 = vcmp.lt.s32.totalorder %v477, 2
        %vm498 = vcmp.lt.s32.totalorder %v477, 3
        %vm499 = vcmp.lt.s32.totalorder %v477, 4
        %v500 = vsel %vm496, %v480, %v483
        %v501 = vsel %vm499, %v489, 2102212464
        %v502 = vsel %vm498, %v486, %v501
        %v503 = vsel %vm497, %v500, %v502
        %v504 = vsel %vm496, %v483, %v486
        %v505 = vsel %vm499, %v492, 920167782
        %v506 = vsel %vm498, %v489, %v505
        %v507 = vsel %vm497, %v504, %v506
        %v508 = vsel %vm496, %v486, %v489
        %v509 = vsel %vm499, %v495, 1326507024
        %v510 = vsel %vm498, %v492, %v509
        %v511 = vsel %vm497, %v508, %v510
        %v512 = vshll.u32 %v472, 8
        %v513 = vmul.u32.u64.compose %v512, %v511
        %v514 = vextract.low.u32 %v513
        %v515 = vextract.high.u32 %v513
        %v516 = vmul.u32.u64.compose %v512, %v507
        %v517 = vextract.low.u32 %v516
        %v518 = vextract.high.u32 %v516
        %v519 = vmul.u32 %v512, %v503
        %v520 = vadd.s32 %v515, %v517
        %vm521 = vc.u32 %v515, %v517
        %v522 = vadd.s32 %v518, 1
        %v523 = vsel %vm521, %v522, %v518
        %v524 = vadd.s32 %v519, %v523
        %v525 = vadd.s32 %v524, 536870912
        %v526 = vshrl.u32 %v525, 30
        %v527 = vshll.u32 %v526, 30
        %v528 = vsub.s32 %v524, %v527
        %vm529 = vcmp.lt.s32.totalorder %v528, 0
        %v530 = vsub.s32 0, %v528
        %v531 = vsel %vm529, %v530, %v528
        %v532 = vclz %v531
        %v533 = vsub.s32 %v532, 2
        %vm534 = vcmp.gt.s32.totalorder 0, %v533
        %v535 = vsel %vm534, 0, %v533
        %v536 = vsub.s32 32, %v535
        %v537 = vshll.u32 %v528, %v535
        %v538 = vshrl.u32 %v520, %v536
        %v539 = vor.u32 %v537, %v538
        %v540 = vsub.s32 4294967266, %v535
        %v541 = vadd.s32 %v540, 127
        %v542 = vshll.u32 %v541, 23
        %v543 = vor.u32 4788187, %v542
        %v544 = vand.u32 2147483647, %v543
        %v546 = vcvt.s32.f32 %v539
        %v547 = vmul.f32 %v546, %v544
        %v548 = vxor.u32 %v547, 2147483648
        %v549 = vsel %vm466, %v548, %v547
        %v550 = vsub.s32 4, %v526
        %v551 = vsel %vm466, %v550, %v526
        %v552 = vsel %vm465, %v360, %v549
        %v553 = vsel %vm465, 0, %v551
        %v554 = vcosq.f32.pop %v552
        %v555 = vsinq.f32.pop %v552
        %vm556 = vweird.f32 %v360
        %v557 = vand.u32 %v553, 3
        %vm558 = vcmp.lt.s32.totalorder %v557, 2
        %vm559 = vcmp.eq.s32.totalorder %v557, 0
        %v560 = vxor.u32 %v555, 2147483648
        %v561 = vsel %vm559, %v554, %v560
        %vm562 = vcmp.eq.s32.totalorder %v557, 2
        %v563 = vxor.u32 %v554, 2147483648
        %v564 = vsel %vm562, %v563, %v555
        %v565 = vsel %vm558, %v561, %v564
        %v566 = vsel %vm556, nan, %v565
        %v567 = vand.u32 2147483647, %v359
        %vm568 = vcmp.le.f32.partialorder %v567, 0.7853982
        %vm569 = vcmp.lt.s32.totalorder %v359, 0
        %v570 = vand.u32 %v359, 2139095040
        %v571 = vshrl.u32 %v570, 23
        %v572 = vsub.s32 %v571, 127
        %v573 = vand.u32 2147483647, %v359
        %v574 = vand.u32 %v573, 8388607
        %v575 = vor.u32 %v574, 8388608
        %v576 = vsub.s32 0, %v575
        %v577 = vadd.s32 %v572, 1
        %vm578 = vcmp.gt.s32.totalorder %v577, 0
        %v579 = vsel %vm578, %v577, 0
        %v580 = vshrl.u32 %v579, 5
        %v581 = vand.u32 %v579, 31
        %v582 = vsub.s32 32, %v581
        %v583 = vshrl.u32 683565275, %v582
        %v584 = vshll.u32 683565275, %v581
        %v585 = vshrl.u32 2475754826, %v582
        %v586 = vor.u32 %v584, %v585
        %v587 = vshll.u32 2475754826, %v581
        %v588 = vshrl.u32 2131351028, %v582
        %v589 = vor.u32 %v587, %v588
        %v590 = vshll.u32 2131351028, %v581
        %v591 = vshrl.u32 2102212464, %v582
        %v592 = vor.u32 %v590, %v591
        %v593 = vshll.u32 2102212464, %v581
        %v594 = vshrl.u32 920167782, %v582
        %v595 = vor.u32 %v593, %v594
        %v596 = vshll.u32 920167782, %v581
        %v597 = vshrl.u32 1326507024, %v582
        %v598 = vor.u32 %v596, %v597
        %vm599 = vcmp.lt.s32.totalorder %v580, 1
        %vm600 = vcmp.lt.s32.totalorder %v580, 2
        %vm601 = vcmp.lt.s32.totalorder %v580, 3
        %vm602 = vcmp.lt.s32.totalorder %v580, 4
        %v603 = vsel %vm599, %v583, %v586
        %v604 = vsel %vm602, %v592, 2102212464
        %v605 = vsel %vm601, %v589, %v604
        %v606 = vsel %vm600, %v603, %v605
        %v607 = vsel %vm599, %v586, %v589
        %v608 = vsel %vm602, %v595, 920167782
        %v609 = vsel %vm601, %v592, %v608
        %v610 = vsel %vm600, %v607, %v609
        %v611 = vsel %vm599, %v589, %v592
        %v612 = vsel %vm602, %v598, 1326507024
        %v613 = vsel %vm601, %v595, %v612
        %v614 = vsel %vm600, %v611, %v613
        %v615 = vshll.u32 %v575, 8
        %v616 = vmul.u32.u64.compose %v615, %v614
        %v617 = vextract.low.u32 %v616
        %v618 = vextract.high.u32 %v616
        %v619 = vmul.u32.u64.compose %v615, %v610
        %v620 = vextract.low.u32 %v619
        %v621 = vextract.high.u32 %v619
        %v622 = vmul.u32 %v615, %v606
        %v623 = vadd.s32 %v618, %v620
        %vm624 = vc.u32 %v618, %v620
        %v625 = vadd.s32 %v621, 1
        %v626 = vsel %vm624, %v625, %v621
        %v627 = vadd.s32 %v622, %v626
        %v628 = vadd.s32 %v627, 536870912
        %v629 = vshrl.u32 %v628, 30
        %v630 = vshll.u32 %v629, 30
        %v631 = vsub.s32 %v627, %v630
        %vm632 = vcmp.lt.s32.totalorder %v631, 0
        %v633 = vsub.s32 0, %v631
        %v634 = vsel %vm632, %v633, %v631
        %v635 = vclz %v634
        %v636 = vsub.s32 %v635, 2
        %vm637 = vcmp.gt.s32.totalorder 0, %v636
        %v638 = vsel %vm637, 0, %v636
        %v639 = vsub.s32 32, %v638
        %v640 = vshll.u32 %v631, %v638
        %v641 = vshrl.u32 %v623, %v639
        %v642 = vor.u32 %v640, %v641
        %v643 = vsub.s32 4294967266, %v638
        %v644 = vadd.s32 %v643, 127
        %v645 = vshll.u32 %v644, 23
        %v646 = vor.u32 4788187, %v645
        %v647 = vand.u32 2147483647, %v646
        %v649 = vcvt.s32.f32 %v642
        %v650 = vmul.f32 %v649, %v647
        %v651 = vxor.u32 %v650, 2147483648
        %v652 = vsel %vm569, %v651, %v650
        %v653 = vsub.s32 4, %v629
        %v654 = vsel %vm569, %v653, %v629
        %v655 = vsel %vm568, %v359, %v652
        %v656 = vsel %vm568, 0, %v654
        %v657 = vcosq.f32.pop %v655
        %v658 = vsinq.f32.pop %v655
        %vm659 = vweird.f32 %v359
        %v660 = vadd.s32 %v656, 3
        %v661 = vand.u32 %v660, 3
        %vm662 = vcmp.lt.s32.totalorder %v661, 2
        %vm663 = vcmp.eq.s32.totalorder %v661, 0
        %v664 = vxor.u32 %v658, 2147483648
        %v665 = vsel %vm663, %v657, %v664
        %vm666 = vcmp.eq.s32.totalorder %v661, 2
        %v667 = vxor.u32 %v657, 2147483648
        %v668 = vsel %vm666, %v667, %v658
        %v669 = vsel %vm662, %v665, %v668
        %v670 = vsel %vm659, nan, %v669
        %v671 = vand.u32 2147483647, %v360
        %vm672 = vcmp.le.f32.partialorder %v671, 0.7853982
        %vm673 = vcmp.lt.s32.totalorder %v360, 0
        %v674 = vand.u32 %v360, 2139095040
        %v675 = vshrl.u32 %v674, 23
        %v676 = vsub.s32 %v675, 127
        %v677 = vand.u32 2147483647, %v360
        %v678 = vand.u32 %v677, 8388607
        %v679 = vor.u32 %v678, 8388608
        %v680 = vsub.s32 0, %v679
        %v681 = vadd.s32 %v676, 1
        %vm682 = vcmp.gt.s32.totalorder %v681, 0
        %v683 = vsel %vm682, %v681, 0
        %v684 = vshrl.u32 %v683, 5
        %v685 = vand.u32 %v683, 31
        %v686 = vsub.s32 32, %v685
        %v687 = vshrl.u32 683565275, %v686
        %v688 = vshll.u32 683565275, %v685
        %v689 = vshrl.u32 2475754826, %v686
        %v690 = vor.u32 %v688, %v689
        %v691 = vshll.u32 2475754826, %v685
        %v692 = vshrl.u32 2131351028, %v686
        %v693 = vor.u32 %v691, %v692
        %v694 = vshll.u32 2131351028, %v685
        %v695 = vshrl.u32 2102212464, %v686
        %v696 = vor.u32 %v694, %v695
        %v697 = vshll.u32 2102212464, %v685
        %v698 = vshrl.u32 920167782, %v686
        %v699 = vor.u32 %v697, %v698
        %v700 = vshll.u32 920167782, %v685
        %v701 = vshrl.u32 1326507024, %v686
        %v702 = vor.u32 %v700, %v701
        %vm703 = vcmp.lt.s32.totalorder %v684, 1
        %vm704 = vcmp.lt.s32.totalorder %v684, 2
        %vm705 = vcmp.lt.s32.totalorder %v684, 3
        %vm706 = vcmp.lt.s32.totalorder %v684, 4
        %v707 = vsel %vm703, %v687, %v690
        %v708 = vsel %vm706, %v696, 2102212464
        %v709 = vsel %vm705, %v693, %v708
        %v710 = vsel %vm704, %v707, %v709
        %v711 = vsel %vm703, %v690, %v693
        %v712 = vsel %vm706, %v699, 920167782
        %v713 = vsel %vm705, %v696, %v712
        %v714 = vsel %vm704, %v711, %v713
        %v715 = vsel %vm703, %v693, %v696
        %v716 = vsel %vm706, %v702, 1326507024
        %v717 = vsel %vm705, %v699, %v716
        %v718 = vsel %vm704, %v715, %v717
        %v719 = vshll.u32 %v679, 8
        %v720 = vmul.u32.u64.compose %v719, %v718
        %v721 = vextract.low.u32 %v720
        %v722 = vextract.high.u32 %v720
        %v723 = vmul.u32.u64.compose %v719, %v714
        %v724 = vextract.low.u32 %v723
        %v725 = vextract.high.u32 %v723
        %v726 = vmul.u32 %v719, %v710
        %v727 = vadd.s32 %v722, %v724
        %vm728 = vc.u32 %v722, %v724
        %v729 = vadd.s32 %v725, 1
        %v730 = vsel %vm728, %v729, %v725
        %v731 = vadd.s32 %v726, %v730
        %v732 = vadd.s32 %v731, 536870912
        %v733 = vshrl.u32 %v732, 30
        %v734 = vshll.u32 %v733, 30
        %v735 = vsub.s32 %v731, %v734
        %vm736 = vcmp.lt.s32.totalorder %v735, 0
        %v737 = vsub.s32 0, %v735
        %v738 = vsel %vm736, %v737, %v735
        %v739 = vclz %v738
        %v740 = vsub.s32 %v739, 2
        %vm741 = vcmp.gt.s32.totalorder 0, %v740
        %v742 = vsel %vm741, 0, %v740
        %v743 = vsub.s32 32, %v742
        %v744 = vshll.u32 %v735, %v742
        %v745 = vshrl.u32 %v727, %v743
        %v746 = vor.u32 %v744, %v745
        %v747 = vsub.s32 4294967266, %v742
        %v748 = vadd.s32 %v747, 127
        %v749 = vshll.u32 %v748, 23
        %v750 = vor.u32 4788187, %v749
        %v751 = vand.u32 2147483647, %v750
        %v753 = vcvt.s32.f32 %v746
        %v754 = vmul.f32 %v753, %v751
        %v755 = vxor.u32 %v754, 2147483648
        %v756 = vsel %vm673, %v755, %v754
        %v757 = vsub.s32 4, %v733
        %v758 = vsel %vm673, %v757, %v733
        %v759 = vsel %vm672, %v360, %v756
        %v760 = vsel %vm672, 0, %v758
        %v761 = vcosq.f32.pop %v759
        %v762 = vsinq.f32.pop %v759
        %vm763 = vweird.f32 %v360
        %v764 = vadd.s32 %v760, 3
        %v765 = vand.u32 %v764, 3
        %vm766 = vcmp.lt.s32.totalorder %v765, 2
        %vm767 = vcmp.eq.s32.totalorder %v765, 0
        %v768 = vxor.u32 %v762, 2147483648
        %v769 = vsel %vm767, %v761, %v768
        %vm770 = vcmp.eq.s32.totalorder %v765, 2
        %v771 = vxor.u32 %v761, 2147483648
        %v772 = vsel %vm770, %v771, %v762
        %v773 = vsel %vm766, %v769, %v772
        %v774 = vsel %vm763, nan, %v773
        %v775 = vld [vmem:[%s3] sm:$0xff]
        %v776 = vld [vmem:[%s3 + $0x8] sm:$0x1]
        %v777 = vld [vmem:[%s4] sm:$0xff]
        %v778 = vld [vmem:[%s4 + $0x8] sm:$0x1]
        %vm779 = vcmask 72704
        %v781 = vsel %vm779, %v670, 0
        %v784 = vsel %vm779, %v774, 0
        %vm786 = vcmask 1040384
        %v788 = vsel %vm786, %v778, 0
        %790 = vmatprep.subr.mxu0 0.0
        %791 = vmatpush1.msra.mxu0 0.0
        %792 = vmatprep.subr.mxu0 0.0
        %793 = vmatpush1.msra.mxu0 0.0
        %794 = vmatprep.subr.mxu0 0.0
        %795 = vmatpush1.msra.mxu0 0.0
        %796 = vmatprep.subr.mxu0 0.0
        %797 = vmatpush1.msra.mxu0 0.0
        %798 = vmatprep.subr.mxu0 0.0
        %799 = vmatpush1.msra.mxu0 0.0
        %800 = vmatprep.subr.mxu0 0.0
        %801 = vmatpush1.msra.mxu0 0.0
        %802 = vmatprep.subr.mxu0 0.0
        %803 = vmatpush1.msra.mxu0 0.0
        %804 = vmatprep.subr.mxu0 0.0
        %805 = vmatpush1.msra.mxu0 0.0
        %806 = vmatprep.subr.mxu0 0.0
        %807 = vmatpush1.msra.mxu0 0.0
        %808 = vmatprep.subr.mxu0 0.0
        %809 = vmatpush1.msra.mxu0 0.0
        %810 = vmatprep.subr.mxu0 0.0
        %811 = vmatpush1.msra.mxu0 0.0
        %812 = vmatprep.subr.mxu0 0.0
        %813 = vmatpush1.msra.mxu0 0.0
        %814 = vmatprep.subr.mxu0 0.0
        %815 = vmatpush1.msra.mxu0 0.0
        %816 = vmatprep.subr.mxu0 0.0
        %817 = vmatpush1.msra.mxu0 0.0
        %818 = vmatprep.subr.mxu0 0.0
        %819 = vmatpush1.msra.mxu0 %v788
        %820 = vmatprep.subr.mxu0 0.0
        %821 = vmatpush1.msra.mxu0 %v777
        %822 = vmatprep.subr.mxu0 0.0
        %823 = vmatpush2.msra.mxu0 0.0
        %824 = vmatprep.subr.mxu0 0.0
        %825 = vmatpush2.msra.mxu0 0.0
        %826 = vmatprep.subr.mxu0 0.0
        %827 = vmatpush2.msra.mxu0 0.0
        %828 = vmatprep.subr.mxu0 0.0
        %829 = vmatpush2.msra.mxu0 0.0
        %830 = vmatprep.subr.mxu0 0.0
        %831 = vmatpush2.msra.mxu0 0.0
        %832 = vmatprep.subr.mxu0 0.0
        %833 = vmatpush2.msra.mxu0 0.0
        %834 = vmatprep.subr.mxu0 0.0
        %835 = vmatpush2.msra.mxu0 0.0
        %836 = vmatprep.subr.mxu0 0.0
        %837 = vmatpush2.msra.mxu0 0.0
        %838 = vmatprep.subr.mxu0 0.0
        %839 = vmatpush2.msra.mxu0 0.0
        %840 = vmatprep.subr.mxu0 0.0
        %841 = vmatpush2.msra.mxu0 0.0
        %842 = vmatprep.subr.mxu0 0.0
        %843 = vmatpush2.msra.mxu0 0.0
        %844 = vmatprep.subr.mxu0 0.0
        %845 = vmatpush2.msra.mxu0 0.0
        %846 = vmatprep.subr.mxu0 0.0
        %847 = vmatpush2.msra.mxu0 0.0
        %848 = vmatprep.subr.mxu0 0.0
        %849 = vmatpush2.msra.mxu0 0.0
        %850 = vmatprep.subr.mxu0 0.0
        %851 = vmatpush2.msra.mxu0 0.0
        %852 = vmatprep.subr.mxu0 0.0
        %853 = vmatpush2.msra.mxu0 0.0
        %854 = vmatprep.mubr.f32.mxu0 0.0
        %855 = vmatmul.mubr.f32.gmra.mxu0 %v781
        %v856 = vpop.f32.mrf.mxu0
        %v857 = vadd.f32 0.0, %v856
        %v858 = vpop.f32.mrf.mxu0
        %859 = vmatprep.mubr.f32.mxu0 0.0
        %860 = vmatmul.mubr.f32.gmra.mxu0 %v784
        %v861 = vpop.f32.mrf.mxu0
        %v862 = vadd.f32 0.0, %v861
        %v863 = vpop.f32.mrf.mxu0
        %864 = vdwg.mxu0
        %v866 = vsel %vm779, %v463, 0
        %v869 = vsel %vm779, %v566, 0
        %v872 = vsel %vm786, %v776, 0
        %874 = vmatprep.subr.mxu0 0.0
        %875 = vmatpush1.msra.mxu0 0.0
        %876 = vmatprep.subr.mxu0 0.0
        %877 = vmatpush1.msra.mxu0 0.0
        %878 = vmatprep.subr.mxu0 0.0
        %879 = vmatpush1.msra.mxu0 0.0
        %880 = vmatprep.subr.mxu0 0.0
        %881 = vmatpush1.msra.mxu0 0.0
        %882 = vmatprep.subr.mxu0 0.0
        %883 = vmatpush1.msra.mxu0 0.0
        %884 = vmatprep.subr.mxu0 0.0
        %885 = vmatpush1.msra.mxu0 0.0
        %886 = vmatprep.subr.mxu0 0.0
        %887 = vmatpush1.msra.mxu0 0.0
        %888 = vmatprep.subr.mxu0 0.0
        %889 = vmatpush1.msra.mxu0 0.0
        %890 = vmatprep.subr.mxu0 0.0
        %891 = vmatpush1.msra.mxu0 0.0
        %892 = vmatprep.subr.mxu0 0.0
        %893 = vmatpush1.msra.mxu0 0.0
        %894 = vmatprep.subr.mxu0 0.0
        %895 = vmatpush1.msra.mxu0 0.0
        %896 = vmatprep.subr.mxu0 0.0
        %897 = vmatpush1.msra.mxu0 0.0
        %898 = vmatprep.subr.mxu0 0.0
        %899 = vmatpush1.msra.mxu0 0.0
        %900 = vmatprep.subr.mxu0 0.0
        %901 = vmatpush1.msra.mxu0 0.0
        %902 = vmatprep.subr.mxu0 0.0
        %903 = vmatpush1.msra.mxu0 %v872
        %904 = vmatprep.subr.mxu0 0.0
        %905 = vmatpush1.msra.mxu0 %v775
        %906 = vmatprep.subr.mxu0 0.0
        %907 = vmatpush2.msra.mxu0 0.0
        %908 = vmatprep.subr.mxu0 0.0
        %909 = vmatpush2.msra.mxu0 0.0
        %910 = vmatprep.subr.mxu0 0.0
        %911 = vmatpush2.msra.mxu0 0.0
        %912 = vmatprep.subr.mxu0 0.0
        %913 = vmatpush2.msra.mxu0 0.0
        %914 = vmatprep.subr.mxu0 0.0
        %915 = vmatpush2.msra.mxu0 0.0
        %916 = vmatprep.subr.mxu0 0.0
        %917 = vmatpush2.msra.mxu0 0.0
        %918 = vmatprep.subr.mxu0 0.0
        %919 = vmatpush2.msra.mxu0 0.0
        %920 = vmatprep.subr.mxu0 0.0
        %921 = vmatpush2.msra.mxu0 0.0
        %922 = vmatprep.subr.mxu0 0.0
        %923 = vmatpush2.msra.mxu0 0.0
        %924 = vmatprep.subr.mxu0 0.0
        %925 = vmatpush2.msra.mxu0 0.0
        %926 = vmatprep.subr.mxu0 0.0
        %927 = vmatpush2.msra.mxu0 0.0
        %928 = vmatprep.subr.mxu0 0.0
        %929 = vmatpush2.msra.mxu0 0.0
        %930 = vmatprep.subr.mxu0 0.0
        %931 = vmatpush2.msra.mxu0 0.0
        %932 = vmatprep.subr.mxu0 0.0
        %933 = vmatpush2.msra.mxu0 0.0
        %934 = vmatprep.subr.mxu0 0.0
        %935 = vmatpush2.msra.mxu0 0.0
        %936 = vmatprep.subr.mxu0 0.0
        %937 = vmatpush2.msra.mxu0 0.0
        %938 = vmatprep.mubr.f32.mxu0 0.0
        %939 = vmatmul.mubr.f32.gmra.mxu0 %v866
        %v940 = vpop.f32.mrf.mxu0
        %v941 = vadd.f32 %v857, %v940
        %v942 = vpop.f32.mrf.mxu0
        %943 = vmatprep.mubr.f32.mxu0 0.0
        %944 = vmatmul.mubr.f32.gmra.mxu0 %v869
        %v945 = vpop.f32.mrf.mxu0
        %v946 = vadd.f32 %v862, %v945
        %v947 = vpop.f32.mrf.mxu0
        %948 = vdwg.mxu0
        %vm949 = vcmask 31744
        %v950 = vsel %vm949, %v941, -inf
        %v951 = vsel %vm949, %v946, -inf
        %v952 = vmax.f32 %v950, %v951
        %v953 = vrot.slane %v952, 4
        %v954 = vmax.f32 %v952, %v953
        %v955 = vrot.slane %v954, 2
        %v956 = vmax.f32 %v954, %v955
        %v957 = vrot.slane %v956, 1
        %v958 = vmax.f32 %v956, %v957
        %v959 = vsub.f32 %v941, %v958
        %v960 = vsub.f32 %v946, %v958
        %v961 = vmul.f32 %v959, 1.442695
        %v962 = vpow.pop %v961
        %v963 = vmul.f32 %v960, 1.442695
        %v964 = vpow.pop %v963
        %v965 = vsel %vm949, %v962, 0.0
        %v966 = vsel %vm949, %v964, 0.0
        %v967 = vadd.f32 %v965, %v966
        %v968 = vrot.slane %v967, 4
        %v969 = vadd.f32 %v967, %v968
        %v970 = vrot.slane %v969, 2
        %v971 = vadd.f32 %v969, %v970
        %v972 = vrot.slane %v971, 1
        %v973 = vadd.f32 %v971, %v972
        %v974 = vrcp.pop %v973
        %v975 = vmul.f32 %v962, %v974
        %v976 = vmul.f32 %v964, %v974
        %v977 = vld [vmem:[%s303] sm:$0xff]
        %v978 = vld [vmem:[%s303 + $0x8] sm:$0xff]
        %980 = vset.pattern.permute.xlu0 0
        %981 = vperm.xlu0 %980, %v977
        %v982 = vpop.permute.xlu0 %981
        %985 = vset.pattern.permute.xlu0 0
        %986 = vperm.xlu0 %985, %v978
        %v987 = vpop.permute.xlu0 %986
        %v989 = vmul.f32 %v975, %v982
        %v990 = vmul.f32 %v976, %v987
        %v991 = vsel %vm949, %v989, 0.0
        %v992 = vsel %vm949, %v990, 0.0
        %v993 = vadd.f32 %v991, %v992
        %v994 = vrot.slane %v993, 4
        %v995 = vadd.f32 %v993, %v994
        %v996 = vrot.slane %v995, 2
        %v997 = vadd.f32 %v995, %v996
        %v998 = vrot.slane %v997, 1
        %v999 = vadd.f32 %v997, %v998
        %v1000 = vadd.f32 %v999, 1e-09
        %v1001 = vrcp.pop %v1000
        %v1002 = vmul.f32 %v989, %v1001
        %v1003 = vmul.f32 %v990, %v1001
        %v1004 = vpack.c.bf16 %v1003, %v1002
        %v1006 = vunpack.c.l.b16 %v1004
        %v1007 = vunpack.c.h.b16 %v1004
        %v1008 = vpack.c.b16 %v1006, %v1006
        %v1009 = vpack.c.b16 %v1007, %v1007
        %vm1012 = vcmask 27648
        %1013 = vst.msk [vmem:[#allocation2] sm:$0xf] %vm1012, %v1008
        %1014 = vst.msk [vmem:[#allocation2 + $0x4] sm:$0xf] %vm1012, %v1009
      $region48: #{tpu_custom_call.1} parent=43 // pred_fallthru
        _
      %v1015 = vld [vmem:[%s310] sm:$0xff]
      %v1016 = vpack.c.bf16 %v1015, %v1015
      %v1017 = vld [vmem:[#allocation2] sm:$0xf]
      %v1018 = vld [vmem:[#allocation2 + $0x4] sm:$0xf]
      %v1021 = vunpack.c.l.b16 %v1017
      %v1022 = vunpack.c.l.b16 %v1018
      %v1023 = vpack.c.b16 %v1022, %v1021
      %vm1025 = vcmask 130048
      %v1027 = vsel %vm1025, %v1016, 0
      %1029 = vmatprep.subr.bf16.mxu0 0
      %1030 = vmatpush1.bf16.msra.mxu0 0
      %1031 = vmatprep.subr.bf16.mxu0 0
      %1032 = vmatpush1.bf16.msra.mxu0 0
      %1033 = vmatprep.subr.bf16.mxu0 0
      %1034 = vmatpush1.bf16.msra.mxu0 0
      %1035 = vmatprep.subr.bf16.mxu0 0
      %1036 = vmatpush1.bf16.msra.mxu0 0
      %1037 = vmatprep.subr.bf16.mxu0 0
      %1038 = vmatpush1.bf16.msra.mxu0 0
      %1039 = vmatprep.subr.bf16.mxu0 0
      %1040 = vmatpush1.bf16.msra.mxu0 0
      %1041 = vmatprep.subr.bf16.mxu0 0
      %1042 = vmatpush1.bf16.msra.mxu0 0
      %1043 = vmatprep.subr.bf16.mxu0 0
      %1044 = vmatpush1.bf16.msra.mxu0 %v1023
      %1045 = vmatprep.subr.bf16.mxu0 0
      %1046 = vmatpush2.bf16.msra.mxu0 0
      %1047 = vmatprep.subr.bf16.mxu0 0
      %1048 = vmatpush2.bf16.msra.mxu0 0
      %1049 = vmatprep.subr.bf16.mxu0 0
      %1050 = vmatpush2.bf16.msra.mxu0 0
      %1051 = vmatprep.subr.bf16.mxu0 0
      %1052 = vmatpush2.bf16.msra.mxu0 0
      %1053 = vmatprep.subr.bf16.mxu0 0
      %1054 = vmatpush2.bf16.msra.mxu0 0
      %1055 = vmatprep.subr.bf16.mxu0 0
      %1056 = vmatpush2.bf16.msra.mxu0 0
      %1057 = vmatprep.subr.bf16.mxu0 0
      %1058 = vmatpush2.bf16.msra.mxu0 0
      %1059 = vmatprep.subr.bf16.mxu0 0
      %1060 = vmatpush2.bf16.msra.mxu0 0
      %1061 = vmatprep.mubr.bf16.mxu0 0
      %1062 = vmatmul.mubr.bf16.gmra.mxu0 %v1027
      %v1063 = vpop.f32.mrf.mxu0
      %v1064 = vadd.f32 0.0, %v1063
      %v1065 = vpop.f32.mrf.mxu0
      %v1066 = vpop.f32.mrf.mxu0
      %v1067 = vpop.f32.mrf.mxu0
      %1068 = vdwg.mxu0
      %vm1069 = vcmask 31744
      %1070 = vst.msk [vmem:[%s317] sm:$0xff] %vm1069, %v1064
      %p1071 = scmp.lt.s32.totalorder %s21, 1
      %s1072 = scalar_select %p1071, %s21, 1
      %p1073 = scmp.lt.s32.totalorder %s22, 0
      %s1074 = scalar_select %p1073, %s22, 0
      %s1075 = sadd.s32 %s1074, %s1072
      %s1076 = smul.addr %s1075, 8
      %s1077 = scalar_lea.vmem %s6, %s1076
      // Predicated region
      $region49: #{tpu_custom_call.1} parent=43 // pred_check
        %p1078 = pneg %p192
      $region50: #{tpu_custom_call.1} parent=43 // pred_check_branch
        %1080 = sbr.rel (%p1078) target = $region52
      $region51: #{tpu_custom_call.1} parent=43 // pred_region
        _
      $region52: #{tpu_custom_call.1} parent=43 // pred_fallthru
        _
    $region44: #{tpu_custom_call.1} parent=5 // pred_fallthru
      _
    %p1081 = scmp.le.s32.totalorder 2, %s12
    // Predicated region
    $region53: #{tpu_custom_call.1} parent=5 // pred_check
      %p1082 = pneg %p1081
    $region54: #{tpu_custom_call.1} parent=5 // pred_check_branch
      %1084 = sbr.rel (%p1082) target = $region56
    $region55: #{tpu_custom_call.1} parent=5 // pred_region
      %s1085 = ssub.s32 %s12, 2
      // Predicated region
      $region57: #{tpu_custom_call.1} parent=55 // pred_check
        %p1086 = pneg %p198
      $region58: #{tpu_custom_call.1} parent=55 // pred_check_branch
        %1088 = sbr.rel (%p1086) target = $region60
      $region59: #{tpu_custom_call.1} parent=55 // pred_region
        %p1089 = scmp.lt.s32.totalorder %s23, 1
        %s1090 = scalar_select %p1089, %s23, 1
        %p1091 = scmp.lt.s32.totalorder %s24, 0
        %s1092 = scalar_select %p1091, %s24, 0
        %s1093 = sadd.s32 %s1092, %s1090
        %s1094 = smul.addr %s1093, 8
        %s1095 = scalar_lea.vmem %s6, %s1094
      $region60: #{tpu_custom_call.1} parent=55 // pred_fallthru
        _
    $region56: #{tpu_custom_call.1} parent=5 // pred_fallthru
      _
  $region6: #{tpu_custom_call.1} parent=0 // loop_footer
    %s16 = sadd.s32 1, %s12
  $region7: #{tpu_custom_call.1} parent=0 // loop_footer_branch
    %11 = sbr.rel target = $region3
  $region8: #{tpu_custom_call.1} parent=0 // loop_exit
    _

</llo_original>
